<compile_context>
chip_gen: v7x
topology: tpu7x:2x2x1
jax: 0.10.0
libtpu: 0.0.40
codegen_flags: <defaults>
</compile_context>

<pallas_src>
import functools

import jax
import jax.numpy as jnp
from jax.experimental import pallas as pl
from jax.experimental.pallas import tpu as pltpu


# ----------------------------------------------------------------------------
# Pallas kernel: fused  (A_hat @ XW + b) -> PReLU, tiled over (row tiles, k)
# ----------------------------------------------------------------------------
def encoder_kernel(a_ref, xw_ref, b_ref, alpha_ref, o_ref, *, tk, xw_resident):
    k = pl.program_id(1)

    @pl.when(k == 0)
    def _init():
        o_ref[...] = jnp.zeros_like(o_ref)          # output block is the accumulator

    if xw_resident:
        # Whole XW lives in VMEM (DMA'd once); slice out the rows for this k.
        start = pl.multiple_of(k * tk, 128)
        xw = xw_ref[pl.ds(start, tk), :]
    else:
        xw = xw_ref[...]                             # (tk, hp) streamed tile

    # (tm, tk) bf16 x (tk, hp) bf16 -> f32 accumulation on the MXU.
    o_ref[...] += jnp.dot(a_ref[...], xw, preferred_element_type=jnp.float32)

    @pl.when(k == pl.num_programs(1) - 1)
    def _epilogue():
        h = o_ref[...] + b_ref[...]                  # bias added exactly once
        o_ref[...] = jnp.where(h > 0.0, h, alpha_ref[...] * h)


def _round_up(v, m):
    return (v + m - 1) // m * m


def _snap_tile(v):
    """Largest power-of-two multiple of 128 that is <= v (v >= 128)."""
    return 128 * (1 << max(0, (v // 128).bit_length() - 1))


# ----------------------------------------------------------------------------
# Glue (plain JAX): dense symmetric-normalized adjacency from edge_index
# ----------------------------------------------------------------------------
def gcn_norm_dense(edge_index, num_nodes, rows_pad=None, cols_pad=None,
                   dtype=jnp.float32):
    """D^-1/2 (A+I) D^-1/2, optionally zero-padded and cast to `dtype`.

    PyG GCNConv aggregates messages src -> dst, so A[dst, src] = 1.  Degrees
    are row sums of A+I, which matches PyG gcn_norm when edge_index contains
    both directions (undirected graphs, as produced by ring_graph).
    """
    rows_pad = num_nodes if rows_pad is None else rows_pad
    cols_pad = num_nodes if cols_pad is None else cols_pad
    src, dst = edge_index[0], edge_index[1]
    a = jnp.zeros((num_nodes, num_nodes), jnp.float32).at[dst, src].add(1.0)
    a = a + jnp.eye(num_nodes, dtype=jnp.float32)    # self-loops
    deg = a.sum(axis=1)
    d_inv_sqrt = jnp.where(deg > 0.0, jax.lax.rsqrt(deg), 0.0)
    a = d_inv_sqrt[:, None] * a * d_inv_sqrt[None, :]
    return jnp.pad(a.astype(dtype),
                   ((0, rows_pad - num_nodes), (0, cols_pad - num_nodes)))


def encoder_forward(x, edge_index, w, b, alpha, *, tm=512, tk=2048,
                    xw_resident=None):
    """GCNConv (cached, sym-norm, self-loops) + PReLU.  Returns [N, H] f32."""
    n, _ = x.shape
    h_dim = w.shape[1]
    hp = _round_up(max(h_dim, 128), 128)             # lane-dense output width

    # Tile selection: pow2 multiples of 128, clamped for small graphs, and
    # capped so there are >= 2 row tiles on medium graphs (both v7x TCs busy).
    n128 = _round_up(n, 128)
    tm = _snap_tile(min(tm, n128))
    if n128 >= 256:
        tm = min(tm, _snap_tile(n128 // 2))
    tk = _snap_tile(min(tk, n128))
    rows_pad = _round_up(n, tm)                      # pad rows / cols
    cols_pad = _round_up(n, tk)                      # independently

    # A_hat built directly in the streamed dtype, already padded (no extra f32
    # pad/cast passes over the N^2 array).
    a_p = gcn_norm_dense(edge_index, n, rows_pad, cols_pad, jnp.bfloat16)

    # Hoisted feature transform: XW computed once (tiny GEMM), cast + padded.
    xw = (x @ w).astype(jnp.bfloat16)
    xw_p = jnp.zeros((cols_pad, hp), jnp.bfloat16).at[:n, :h_dim].set(xw)

    b_p = jnp.zeros((1, hp), jnp.float32).at[:, :h_dim].set(b)
    alpha_p = jnp.zeros((1, hp), jnp.float32).at[:, :h_dim].set(alpha)

    # Keep XW fully VMEM-resident (single DMA) when it fits a v7x-safe budget;
    # otherwise stream (tk, hp) tiles per reduction step.
    if xw_resident is None:
        xw_resident = cols_pad * hp * 2 <= 8 * 1024 * 1024
    if xw_resident:
        xw_spec = pl.BlockSpec((cols_pad, hp), lambda i, k: (0, 0))
        xw_vmem = cols_pad * hp * 2
    else:
        xw_spec = pl.BlockSpec((tk, hp), lambda i, k: (k, 0))
        xw_vmem = 2 * tk * hp * 2

    grid = (rows_pad // tm, cols_pad // tk)

    # Raise the scoped VMEM limit only if the (double-buffered) footprint needs it.
    vmem_est = 2 * tm * tk * 2 + xw_vmem + 2 * tm * hp * 4 + 4 * hp * 4
    cp_kwargs = dict(dimension_semantics=("parallel", "arbitrary"))
    if vmem_est > 24 * 1024 * 1024:
        cp_kwargs["vmem_limit_bytes"] = int(min(vmem_est * 1.5,
                                                100 * 1024 * 1024))

    out = pl.pallas_call(
        functools.partial(encoder_kernel, tk=tk, xw_resident=xw_resident),
        out_shape=jax.ShapeDtypeStruct((rows_pad, hp), jnp.float32),
        grid_spec=pltpu.PrefetchScalarGridSpec(
            num_scalar_prefetch=0,
            grid=grid,
            in_specs=[
                pl.BlockSpec((tm, tk), lambda i, k: (i, k)),   # A_hat tile
                xw_spec,                                       # X @ W
                pl.BlockSpec((1, hp), lambda i, k: (0, 0)),    # bias
                pl.BlockSpec((1, hp), lambda i, k: (0, 0)),    # PReLU alpha
            ],
            out_specs=pl.BlockSpec((tm, hp), lambda i, k: (i, 0)),
        ),
        compiler_params=pltpu.CompilerParams(**cp_kwargs),
    )(a_p, xw_p, b_p, alpha_p)

    return out[:n, :h_dim]


# ----------------------------------------------------------------------------
# Helpers + pure-JAX reference (evaluated on the same bf16-rounded operands)
# ----------------------------------------------------------------------------
def glorot(key, shape):
    fan_in, fan_out = shape
    limit = jnp.sqrt(6.0 / (fan_in + fan_out))
    return jax.random.uniform(key, shape, jnp.float32, -limit, limit)


def ring_graph(num_nodes):
    fwd = jnp.arange(num_nodes, dtype=jnp.int32)
    nxt = (fwd + 1) % num_nodes
    return jnp.stack(
        [jnp.concatenate([fwd, nxt]), jnp.concatenate([nxt, fwd])], axis=0)


def encoder_ref(a_hat, x, w, b, alpha):
    bf = lambda t: t.astype(jnp.bfloat16).astype(jnp.float32)
    h = bf(a_hat) @ bf(x @ w) + b
    return jnp.where(h > 0, h, alpha * h)


if __name__ == "__main__":
    key = jax.random.PRNGKey(0)
    k_x1, k_w, k_x2 = jax.random.split(key, 3)

    in_channels = 8
    hidden_channels = 32

    w = glorot(k_w, (in_channels, hidden_channels))
    b = jnp.zeros((1, hidden_channels), jnp.float32)
    alpha = jnp.full((1, hidden_channels), 0.25, jnp.float32)

    # ---- case 1: tiny graph, single-tile grid, XW resident -------------------
    n1 = 16
    edge_index1 = ring_graph(n1)
    x1 = jax.random.normal(k_x1, (n1, in_channels), jnp.float32)
    out1 = jax.block_until_ready(encoder_forward(x1, edge_index1, w, b, alpha))
    ref1 = encoder_ref(gcn_norm_dense(edge_index1, n1), x1, w, b, alpha)
    assert out1.shape == (n1, hidden_channels)
    assert jnp.allclose(out1, ref1, atol=2e-2, rtol=2e-2)

    # ---- case 2: larger graph, multi-tile accumulation, XW resident ----------
    n2 = 300                                   # rows pad to 384, cols to 512
    edge_index2 = ring_graph(n2)
    x2 = jax.random.normal(k_x2, (n2, in_channels), jnp.float32)
    a_hat2 = gcn_norm_dense(edge_index2, n2)
    ref2 = encoder_ref(a_hat2, x2, w, b, alpha)

    out2 = jax.block_until_ready(encoder_forward(x2, edge_index2, w, b, alpha))
    assert out2.shape == (n2, hidden_channels)
    assert jnp.allclose(out2, ref2, atol=2e-2, rtol=2e-2)

    # ---- case 3: same graph, forced streamed-XW path (large-N fallback) ------
    out3 = jax.block_until_ready(
        encoder_forward(x2, edge_index2, w, b, alpha,
                        tm=128, tk=128, xw_resident=False))
    assert out3.shape == (n2, hidden_channels)
    assert jnp.allclose(out3, ref2, atol=2e-2, rtol=2e-2)

    print("KERNEL_OK")
</pallas_src>

<mosaic_0001>
module attributes {stable_mosaic.version = 11 : i64} {
  func.func @encoder_kernel(%arg0: i32, %arg1: i32, %arg2: memref<128x128xbf16, #tpu.memory_space<vmem>>, %arg3: memref<128x128xbf16, #tpu.memory_space<vmem>>, %arg4: memref<1x128xf32, #tpu.memory_space<vmem>>, %arg5: memref<1x128xf32, #tpu.memory_space<vmem>>, %arg6: memref<128x128xf32, #tpu.memory_space<vmem>>) attributes {dimension_semantics = [#tpu.dimension_semantics<parallel>, #tpu.dimension_semantics<arbitrary>], iteration_bounds = array<i64: 1, 1>, scalar_prefetch = 0 : i64, scratch_operands = 0 : i64, tpu.core_type = #tpu.core_type<tc>, window_params = [{transform_indices = @transform_0, window_bounds = array<i64: 128, 128>}, {pipeline_mode = #tpu.pipeline_mode<synchronous>, transform_indices = @transform_1, window_bounds = array<i64: 128, 128>}, {pipeline_mode = #tpu.pipeline_mode<synchronous>, transform_indices = @transform_2, window_bounds = array<i64: 1, 128>}, {pipeline_mode = #tpu.pipeline_mode<synchronous>, transform_indices = @transform_3, window_bounds = array<i64: 1, 128>}, {transform_indices = @transform_4, window_bounds = array<i64: 128, 128>}]} {
    %c0_i32 = arith.constant 0 : i32
    %0 = arith.cmpi eq, %arg1, %c0_i32 : i32
    %1 = arith.extui %0 : i1 to i32
    %c0_i32_0 = arith.constant 0 : i32
    %2 = arith.cmpi ne, %1, %c0_i32_0 : i32
    scf.if %2 {
      %cst_9 = arith.constant 0.000000e+00 : f32
      %15 = vector.broadcast %cst_9 : f32 to vector<128x128xf32>
      %c0_10 = arith.constant 0 : index
      %c0_11 = arith.constant 0 : index
      %16 = vector.load %arg6[%c0_10, %c0_11] : memref<128x128xf32, #tpu.memory_space<vmem>>, vector<128x128xf32>
      tpu.vector_store %arg6[%c0_10, %c0_11], %15 {strides = array<i32>} : memref<128x128xf32, #tpu.memory_space<vmem>>, vector<128x128xf32>,
    } else {
    }
    %c128_i32 = arith.constant 128 : i32
    %3 = arith.muli %arg1, %c128_i32 : i32
    %4 = tpu.assume_multiple %3, 128 : i32
    %5 = arith.index_cast %4 : i32 to index
    %c0 = arith.constant 0 : index
    %6 = vector.load %arg3[%5, %c0] : memref<128x128xbf16, #tpu.memory_space<vmem>>, vector<128x128xbf16>
    %c0_1 = arith.constant 0 : index
    %c0_2 = arith.constant 0 : index
    %7 = vector.load %arg6[%c0_1, %c0_2] : memref<128x128xf32, #tpu.memory_space<vmem>>, vector<128x128xf32>
    %c0_3 = arith.constant 0 : index
    %c0_4 = arith.constant 0 : index
    %8 = vector.load %arg2[%c0_3, %c0_4] : memref<128x128xbf16, #tpu.memory_space<vmem>>, vector<128x128xbf16>
    %cst = arith.constant dense<0.000000e+00> : vector<128x128xf32>
    %9 = tpu.matmul %8, %6, %cst {dimension_numbers = #tpu.dot_dimension_numbers<[1], [0], [0], [1], [0, 0, 1, 1], [], []>} : vector<128x128xbf16>, vector<128x128xbf16>, vector<128x128xf32> -> vector<128x128xf32>
    %10 = arith.addf %7, %9 : vector<128x128xf32>
    %c0_5 = arith.constant 0 : index
    %c0_6 = arith.constant 0 : index
    %11 = vector.load %arg6[%c0_5, %c0_6] : memref<128x128xf32, #tpu.memory_space<vmem>>, vector<128x128xf32>
    tpu.vector_store %arg6[%c0_5, %c0_6], %10 {strides = array<i32>} : memref<128x128xf32, #tpu.memory_space<vmem>>, vector<128x128xf32>,
    %c0_i32_7 = arith.constant 0 : i32
    %12 = arith.cmpi eq, %arg1, %c0_i32_7 : i32
    %13 = arith.extui %12 : i1 to i32
    %c0_i32_8 = arith.constant 0 : i32
    %14 = arith.cmpi ne, %13, %c0_i32_8 : i32
    scf.if %14 {
      %c0_9 = arith.constant 0 : index
      %c0_10 = arith.constant 0 : index
      %15 = vector.load %arg6[%c0_9, %c0_10] : memref<128x128xf32, #tpu.memory_space<vmem>>, vector<128x128xf32>
      %c0_11 = arith.constant 0 : index
      %c0_12 = arith.constant 0 : index
      %16 = vector.load %arg4[%c0_11, %c0_12] : memref<1x128xf32, #tpu.memory_space<vmem>>, vector<1x128xf32>
      %17 = vector.broadcast %16 : vector<1x128xf32> to vector<128x128xf32>
      %18 = arith.addf %15, %17 : vector<128x128xf32>
      %cst_13 = arith.constant 0.000000e+00 : f32
      %19 = vector.broadcast %cst_13 : f32 to vector<128x128xf32>
      %20 = arith.cmpf ogt, %18, %19 : vector<128x128xf32>
      %c0_14 = arith.constant 0 : index
      %c0_15 = arith.constant 0 : index
      %21 = vector.load %arg5[%c0_14, %c0_15] : memref<1x128xf32, #tpu.memory_space<vmem>>, vector<1x128xf32>
      %22 = vector.broadcast %21 : vector<1x128xf32> to vector<128x128xf32>
      %23 = arith.mulf %22, %18 : vector<128x128xf32>
      %24 = arith.select %20, %18, %23 : vector<128x128xi1>, vector<128x128xf32>
      %c0_16 = arith.constant 0 : index
      %c0_17 = arith.constant 0 : index
      %25 = vector.load %arg6[%c0_16, %c0_17] : memref<128x128xf32, #tpu.memory_space<vmem>>, vector<128x128xf32>
      tpu.vector_store %arg6[%c0_16, %c0_17], %24 {strides = array<i32>} : memref<128x128xf32, #tpu.memory_space<vmem>>, vector<128x128xf32>,
    } else {
    }
    return
  }
  func.func @transform_0(%arg0: i32, %arg1: i32) -> (i32, i32) {
    %c0_i32 = arith.constant 0 : i32
    return %arg0, %arg1 : i32, i32
  }
  func.func @transform_1(%arg0: i32, %arg1: i32) -> (i32, i32) {
    %c0_i32 = arith.constant 0 : i32
    %c0_i32_0 = arith.constant 0 : i32
    %c0_i32_1 = arith.constant 0 : i32
    return %c0_i32, %c0_i32_0 : i32, i32
  }
  func.func @transform_2(%arg0: i32, %arg1: i32) -> (i32, i32) {
    %c0_i32 = arith.constant 0 : i32
    %c0_i32_0 = arith.constant 0 : i32
    %c0_i32_1 = arith.constant 0 : i32
    return %c0_i32, %c0_i32_0 : i32, i32
  }
  func.func @transform_3(%arg0: i32, %arg1: i32) -> (i32, i32) {
    %c0_i32 = arith.constant 0 : i32
    %c0_i32_0 = arith.constant 0 : i32
    %c0_i32_1 = arith.constant 0 : i32
    return %c0_i32, %c0_i32_0 : i32, i32
  }
  func.func @transform_4(%arg0: i32, %arg1: i32) -> (i32, i32) {
    %c0_i32 = arith.constant 0 : i32
    %c0_i32_0 = arith.constant 0 : i32
    return %arg0, %c0_i32 : i32, i32
  }
}

</mosaic_0001>

<llo_original>
// kernel: tpu_custom_call.1
$region0: #{tpu_custom_call.1}
  #allocation0 [shape = 'u32[]', space=smem, size = 0x4, offset = 0x4, fixed_abs, tag = 'smem constant byte address 0x4 - core index']
  #allocation1 [shape = 'u32[144,128]{1,0:T(1,128)}', space=vmem, size = 0x12000, scoped, tag = 'internal scratch']
  %s0 = inlined_call_operand.hbm [shape: bf16[128,128], index: 0, kind: input, shape index: {}]
  %s1 = inlined_call_operand.hbm [shape: bf16[128,128], index: 1, kind: input, shape index: {}]
  %s2 = inlined_call_operand.vmem [shape: f32[1,128], index: 2, kind: input, shape index: {}]
  %s3 = inlined_call_operand.vmem [shape: f32[1,128], index: 3, kind: input, shape index: {}]
  %s4 = inlined_call_operand.hbm [shape: f32[128,128], index: 4, kind: output, shape index: {}]
  %s5 = sld [smem:[#allocation0]]
  $region42: #{tpu_custom_call.1} parent=0
    _
  %s7 = ssub.s32 1, %s5
  %s8 = scalar_select 0, %s7, %s5
  $region1: #{tpu_custom_call.1} parent=0
    #allocation2 [shape = 'u8[32768]{0}', space=vmem, size = 0x8000, scoped, tag = 'input window, operand 0, single buffered']
    #allocation3 [shape = 's32[1]{0}', space=sflag, size = 0x4, scoped, tag = 'scoped memory for tpu_custom_call.1']
    #allocation4 [shape = 's32[1]{0}', space=sflag, size = 0x4, scoped, tag = 'scoped memory for tpu_custom_call.1']
    #allocation5 [shape = 'u8[32768]{0}', space=vmem, size = 0x8000, scoped, tag = 'input window, operand 1, single buffered']
    #allocation6 [shape = 's32[1]{0}', space=sflag, size = 0x4, scoped, tag = 'scoped memory for tpu_custom_call.1']
    #allocation7 [shape = 'u8[65536]{0}', space=vmem, size = 0x10000, scoped, tag = 'output window, operand 0, single buffered']
    %9 = vsyncpa [#allocation3], 0
    %10 = vsyncpa [#allocation6], 0
    %11 = vsyncpa [#allocation4], 0
    // Predicated region
    $region2: #{tpu_custom_call.1} parent=1 // pred_check
      _
    $region3: #{tpu_custom_call.1} parent=1 // pred_check_branch
      %13 = sbr.rel (0) target = $region5
    $region4: #{tpu_custom_call.1} parent=1 // pred_region
      %s15 = ssub.s32 1024, 1024
      %16 = vsyncadd [#allocation3], %s15
      %s17 = sshll.u32 [#allocation2], 4
      %s18 = int_to_ptr.vmem [resolvable:$true] %s17
      %23 = dma.hbm_to_vmem [thread:$0]  %s0, 1024, %s18, [#allocation3], 64, 64, 4
    $region5: #{tpu_custom_call.1} parent=1 // pred_fallthru
      _
    // Predicated region
    $region6: #{tpu_custom_call.1} parent=1 // pred_check
      _
    $region7: #{tpu_custom_call.1} parent=1 // pred_check_branch
      %25 = sbr.rel (0) target = $region9
    $region8: #{tpu_custom_call.1} parent=1 // pred_region
      %s27 = ssub.s32 1024, 1024
      %28 = vsyncadd [#allocation6], %s27
      %s29 = sshll.u32 [#allocation5], 4
      %s30 = int_to_ptr.vmem [resolvable:$true] %s29
      %35 = dma.hbm_to_vmem [thread:$0]  %s1, 1024, %s30, [#allocation6], 64, 64, 4
    $region9: #{tpu_custom_call.1} parent=1 // pred_fallthru
      _
    // Predicated region
    $region10: #{tpu_custom_call.1} parent=1 // pred_check
      _
    $region11: #{tpu_custom_call.1} parent=1 // pred_check_branch
      %37 = sbr.rel (0) target = $region13
    $region12: #{tpu_custom_call.1} parent=1 // pred_region
      _
    $region13: #{tpu_custom_call.1} parent=1 // pred_fallthru
      _
    // Predicated region
    $region14: #{tpu_custom_call.1} parent=1 // pred_check
      _
    $region15: #{tpu_custom_call.1} parent=1 // pred_check_branch
      %39 = sbr.rel (0) target = $region17
    $region16: #{tpu_custom_call.1} parent=1 // pred_region
      _
    $region17: #{tpu_custom_call.1} parent=1 // pred_fallthru
      _
    // Predicated region
    $region18: #{tpu_custom_call.1} parent=1 // pred_check
      _
    $region19: #{tpu_custom_call.1} parent=1 // pred_check_branch
      %41 = sbr.rel (0) target = $region21
    $region20: #{tpu_custom_call.1} parent=1 // pred_region
      %42 = dma.done [#allocation3], 1024
    $region21: #{tpu_custom_call.1} parent=1 // pred_fallthru
      _
    // Predicated region
    $region22: #{tpu_custom_call.1} parent=1 // pred_check
      _
    $region23: #{tpu_custom_call.1} parent=1 // pred_check_branch
      %44 = sbr.rel (0) target = $region25
    $region24: #{tpu_custom_call.1} parent=1 // pred_region
      %45 = dma.done [#allocation6], 1024
    $region25: #{tpu_custom_call.1} parent=1 // pred_fallthru
      _
    %p47 = scmp.eq.s32.totalorder 0, 0
    // Predicated region
    $region26: #{tpu_custom_call.1} parent=1 // pred_check
      %p48 = pneg %p47
    $region27: #{tpu_custom_call.1} parent=1 // pred_check_branch
      %50 = sbr.rel (%p48) target = $region29
    $region28: #{tpu_custom_call.1} parent=1 // pred_region
      %51 = vst [vmem:[#allocation7] sm:$0xff] 0.0
      %52 = vst [vmem:[#allocation7 + $0x8] sm:$0xff] 0.0
      %53 = vst [vmem:[#allocation7 + $0x10] sm:$0xff] 0.0
      %54 = vst [vmem:[#allocation7 + $0x18] sm:$0xff] 0.0
      %55 = vst [vmem:[#allocation7 + $0x20] sm:$0xff] 0.0
      %56 = vst [vmem:[#allocation7 + $0x28] sm:$0xff] 0.0
      %57 = vst [vmem:[#allocation7 + $0x30] sm:$0xff] 0.0
      %58 = vst [vmem:[#allocation7 + $0x38] sm:$0xff] 0.0
      %59 = vst [vmem:[#allocation7 + $0x40] sm:$0xff] 0.0
      %60 = vst [vmem:[#allocation7 + $0x48] sm:$0xff] 0.0
      %61 = vst [vmem:[#allocation7 + $0x50] sm:$0xff] 0.0
      %62 = vst [vmem:[#allocation7 + $0x58] sm:$0xff] 0.0
      %63 = vst [vmem:[#allocation7 + $0x60] sm:$0xff] 0.0
      %64 = vst [vmem:[#allocation7 + $0x68] sm:$0xff] 0.0
      %65 = vst [vmem:[#allocation7 + $0x70] sm:$0xff] 0.0
      %66 = vst [vmem:[#allocation7 + $0x78] sm:$0xff] 0.0
    $region29: #{tpu_custom_call.1} parent=1 // pred_fallthru
      _
    %s67 = smul.u32 0, 128
    %s68 = sshra.s32 %s67, 3
    %s69 = sand.u32 %s67, 7
    %s70 = smul.addr %s68, 4
    %s71 = scalar_lea.vmem [#allocation5], %s70
    %v72 = vld [vmem:[%s71] sm:$0xf]
    %v73 = vld [vmem:[%s71 + $0x4] sm:$0xf]
    %v74 = vld [vmem:[%s71 + $0x8] sm:$0xf]
    %v75 = vld [vmem:[%s71 + $0xc] sm:$0xf]
    %v76 = vld [vmem:[%s71 + $0x10] sm:$0xf]
    %v77 = vld [vmem:[%s71 + $0x14] sm:$0xf]
    %v78 = vld [vmem:[%s71 + $0x18] sm:$0xf]
    %v79 = vld [vmem:[%s71 + $0x1c] sm:$0xf]
    %v80 = vld [vmem:[%s71 + $0x20] sm:$0xf]
    %v81 = vld [vmem:[%s71 + $0x24] sm:$0xf]
    %v82 = vld [vmem:[%s71 + $0x28] sm:$0xf]
    %v83 = vld [vmem:[%s71 + $0x2c] sm:$0xf]
    %v84 = vld [vmem:[%s71 + $0x30] sm:$0xf]
    %v85 = vld [vmem:[%s71 + $0x34] sm:$0xf]
    %v86 = vld [vmem:[%s71 + $0x38] sm:$0xf]
    %v87 = vld [vmem:[%s71 + $0x3c] sm:$0xf]
    %v88 = vld [vmem:[#allocation7] sm:$0xff]
    %v89 = vld [vmem:[#allocation7 + $0x8] sm:$0xff]
    %v90 = vld [vmem:[#allocation7 + $0x10] sm:$0xff]
    %v91 = vld [vmem:[#allocation7 + $0x18] sm:$0xff]
    %v92 = vld [vmem:[#allocation7 + $0x20] sm:$0xff]
    %v93 = vld [vmem:[#allocation7 + $0x28] sm:$0xff]
    %v94 = vld [vmem:[#allocation7 + $0x30] sm:$0xff]
    %v95 = vld [vmem:[#allocation7 + $0x38] sm:$0xff]
    %v96 = vld [vmem:[#allocation7 + $0x40] sm:$0xff]
    %v97 = vld [vmem:[#allocation7 + $0x48] sm:$0xff]
    %v98 = vld [vmem:[#allocation7 + $0x50] sm:$0xff]
    %v99 = vld [vmem:[#allocation7 + $0x58] sm:$0xff]
    %v100 = vld [vmem:[#allocation7 + $0x60] sm:$0xff]
    %v101 = vld [vmem:[#allocation7 + $0x68] sm:$0xff]
    %v102 = vld [vmem:[#allocation7 + $0x70] sm:$0xff]
    %v103 = vld [vmem:[#allocation7 + $0x78] sm:$0xff]
    %v104 = vld [vmem:[#allocation2] sm:$0xf]
    %v105 = vld [vmem:[#allocation2 + $0x4] sm:$0xf]
    %v106 = vld [vmem:[#allocation2 + $0x8] sm:$0xf]
    %v107 = vld [vmem:[#allocation2 + $0xc] sm:$0xf]
    %v108 = vld [vmem:[#allocation2 + $0x10] sm:$0xf]
    %v109 = vld [vmem:[#allocation2 + $0x14] sm:$0xf]
    %v110 = vld [vmem:[#allocation2 + $0x18] sm:$0xf]
    %v111 = vld [vmem:[#allocation2 + $0x1c] sm:$0xf]
    %v112 = vld [vmem:[#allocation2 + $0x20] sm:$0xf]
    %v113 = vld [vmem:[#allocation2 + $0x24] sm:$0xf]
    %v114 = vld [vmem:[#allocation2 + $0x28] sm:$0xf]
    %v115 = vld [vmem:[#allocation2 + $0x2c] sm:$0xf]
    %v116 = vld [vmem:[#allocation2 + $0x30] sm:$0xf]
    %v117 = vld [vmem:[#allocation2 + $0x34] sm:$0xf]
    %v118 = vld [vmem:[#allocation2 + $0x38] sm:$0xf]
    %v119 = vld [vmem:[#allocation2 + $0x3c] sm:$0xf]
    %v136 = vunpack.c.l.b16 %v104
    %v137 = vunpack.c.l.b16 %v105
    %v138 = vunpack.c.l.b16 %v106
    %v139 = vunpack.c.l.b16 %v107
    %v140 = vunpack.c.l.b16 %v108
    %v141 = vunpack.c.l.b16 %v109
    %v142 = vunpack.c.l.b16 %v110
    %v143 = vunpack.c.l.b16 %v111
    %v144 = vunpack.c.l.b16 %v112
    %v145 = vunpack.c.l.b16 %v113
    %v146 = vunpack.c.l.b16 %v114
    %v147 = vunpack.c.l.b16 %v115
    %v148 = vunpack.c.l.b16 %v116
    %v149 = vunpack.c.l.b16 %v117
    %v150 = vunpack.c.l.b16 %v118
    %v151 = vunpack.c.l.b16 %v119
    %v152 = vpack.c.b16 %v137, %v136
    %v153 = vpack.c.b16 %v139, %v138
    %v154 = vpack.c.b16 %v141, %v140
    %v155 = vpack.c.b16 %v143, %v142
    %v156 = vpack.c.b16 %v145, %v144
    %v157 = vpack.c.b16 %v147, %v146
    %v158 = vpack.c.b16 %v149, %v148
    %v159 = vpack.c.b16 %v151, %v150
    %v184 = vunpack.c.l.b16 %v72
    %v185 = vunpack.c.l.b16 %v73
    %v186 = vunpack.c.l.b16 %v74
    %v187 = vunpack.c.l.b16 %v75
    %v188 = vunpack.c.l.b16 %v76
    %v189 = vunpack.c.l.b16 %v77
    %v190 = vunpack.c.l.b16 %v78
    %v191 = vunpack.c.l.b16 %v79
    %v192 = vunpack.c.l.b16 %v80
    %v193 = vunpack.c.l.b16 %v81
    %v194 = vunpack.c.l.b16 %v82
    %v195 = vunpack.c.l.b16 %v83
    %v196 = vunpack.c.l.b16 %v84
    %v197 = vunpack.c.l.b16 %v85
    %v198 = vunpack.c.l.b16 %v86
    %v199 = vunpack.c.l.b16 %v87
    %v200 = vpack.c.b16 %v185, %v184
    %v201 = vpack.c.b16 %v187, %v186
    %v202 = vpack.c.b16 %v189, %v188
    %v203 = vpack.c.b16 %v191, %v190
    %v204 = vpack.c.b16 %v193, %v192
    %v205 = vpack.c.b16 %v195, %v194
    %v206 = vpack.c.b16 %v197, %v196
    %v207 = vpack.c.b16 %v199, %v198
    %216 = vmatprep.subr.bf16.mxu0 0
    %217 = vmatpush1.bf16.msra.mxu0 %v200
    %218 = vmatprep.subr.bf16.mxu0 0
    %219 = vmatpush1.bf16.msra.mxu0 %v201
    %220 = vmatprep.subr.bf16.mxu0 0
    %221 = vmatpush1.bf16.msra.mxu0 %v202
    %222 = vmatprep.subr.bf16.mxu0 0
    %223 = vmatpush1.bf16.msra.mxu0 %v203
    %224 = vmatprep.subr.bf16.mxu0 0
    %225 = vmatpush1.bf16.msra.mxu0 %v204
    %226 = vmatprep.subr.bf16.mxu0 0
    %227 = vmatpush1.bf16.msra.mxu0 %v205
    %228 = vmatprep.subr.bf16.mxu0 0
    %229 = vmatpush1.bf16.msra.mxu0 %v206
    %230 = vmatprep.subr.bf16.mxu0 0
    %231 = vmatpush1.bf16.msra.mxu0 %v207
    %232 = vmatprep.subr.bf16.mxu0 0
    %233 = vmatpush1.bf16.msra.mxu0 0
    %234 = vmatprep.subr.bf16.mxu0 0
    %235 = vmatpush1.bf16.msra.mxu0 0
    %236 = vmatprep.subr.bf16.mxu0 0
    %237 = vmatpush1.bf16.msra.mxu0 0
    %238 = vmatprep.subr.bf16.mxu0 0
    %239 = vmatpush1.bf16.msra.mxu0 0
    %240 = vmatprep.subr.bf16.mxu0 0
    %241 = vmatpush1.bf16.msra.mxu0 0
    %242 = vmatprep.subr.bf16.mxu0 0
    %243 = vmatpush1.bf16.msra.mxu0 0
    %244 = vmatprep.subr.bf16.mxu0 0
    %245 = vmatpush1.bf16.msra.mxu0 0
    %246 = vmatprep.subr.bf16.mxu0 0
    %247 = vmatpush1.bf16.msra.mxu0 0
    %248 = vmatprep.mubr.bf16.mxu0 0
    %249 = vmatmul.mubr.bf16.gmra.mrb[0].mxu0 %v152
    %v250 = vpop.f32.mrb[0].mxu0
    %v251 = vadd.f32 0.0, %v250
    %v252 = vpop.f32.mrb[0].mxu0
    %v253 = vpop.f32.mrb[0].mxu0
    %v254 = vadd.f32 0.0, %v253
    %v255 = vpop.f32.mrb[0].mxu0
    %256 = vmatprep.mubr.bf16.mxu0 0
    %257 = vmatmul.mubr.bf16.gmra.mrb[0].mxu0 %v153
    %v258 = vpop.f32.mrb[0].mxu0
    %v259 = vadd.f32 0.0, %v258
    %v260 = vpop.f32.mrb[0].mxu0
    %v261 = vpop.f32.mrb[0].mxu0
    %v262 = vadd.f32 0.0, %v261
    %v263 = vpop.f32.mrb[0].mxu0
    %264 = vmatprep.mubr.bf16.mxu0 0
    %265 = vmatmul.mubr.bf16.gmra.mrb[0].mxu0 %v154
    %v266 = vpop.f32.mrb[0].mxu0
    %v267 = vadd.f32 0.0, %v266
    %v268 = vpop.f32.mrb[0].mxu0
    %v269 = vpop.f32.mrb[0].mxu0
    %v270 = vadd.f32 0.0, %v269
    %v271 = vpop.f32.mrb[0].mxu0
    %272 = vmatprep.mubr.bf16.mxu0 0
    %273 = vmatmul.mubr.bf16.gmra.mrb[0].mxu0 %v155
    %v274 = vpop.f32.mrb[0].mxu0
    %v275 = vadd.f32 0.0, %v274
    %v276 = vpop.f32.mrb[0].mxu0
    %v277 = vpop.f32.mrb[0].mxu0
    %v278 = vadd.f32 0.0, %v277
    %v279 = vpop.f32.mrb[0].mxu0
    %280 = vmatprep.mubr.bf16.mxu0 0
    %281 = vmatmul.mubr.bf16.gmra.mrb[0].mxu0 %v156
    %v282 = vpop.f32.mrb[0].mxu0
    %v283 = vadd.f32 0.0, %v282
    %v284 = vpop.f32.mrb[0].mxu0
    %v285 = vpop.f32.mrb[0].mxu0
    %v286 = vadd.f32 0.0, %v285
    %v287 = vpop.f32.mrb[0].mxu0
    %288 = vmatprep.mubr.bf16.mxu0 0
    %289 = vmatmul.mubr.bf16.gmra.mrb[0].mxu0 %v157
    %v290 = vpop.f32.mrb[0].mxu0
    %v291 = vadd.f32 0.0, %v290
    %v292 = vpop.f32.mrb[0].mxu0
    %v293 = vpop.f32.mrb[0].mxu0
    %v294 = vadd.f32 0.0, %v293
    %v295 = vpop.f32.mrb[0].mxu0
    %296 = vmatprep.mubr.bf16.mxu0 0
    %297 = vmatmul.mubr.bf16.gmra.mrb[0].mxu0 %v158
    %v298 = vpop.f32.mrb[0].mxu0
    %v299 = vadd.f32 0.0, %v298
    %v300 = vpop.f32.mrb[0].mxu0
    %v301 = vpop.f32.mrb[0].mxu0
    %v302 = vadd.f32 0.0, %v301
    %v303 = vpop.f32.mrb[0].mxu0
    %304 = vmatprep.mubr.bf16.mxu0 0
    %305 = vmatmul.mubr.bf16.gmra.mrb[0].mxu0 %v159
    %v306 = vpop.f32.mrb[0].mxu0
    %v307 = vadd.f32 0.0, %v306
    %v308 = vpop.f32.mrb[0].mxu0
    %v309 = vpop.f32.mrb[0].mxu0
    %v310 = vadd.f32 0.0, %v309
    %v311 = vpop.f32.mrb[0].mxu0
    %312 = vdwg.mxu0
    %v313 = vadd.f32 %v88, %v251
    %v314 = vadd.f32 %v89, %v254
    %v315 = vadd.f32 %v90, %v259
    %v316 = vadd.f32 %v91, %v262
    %v317 = vadd.f32 %v92, %v267
    %v318 = vadd.f32 %v93, %v270
    %v319 = vadd.f32 %v94, %v275
    %v320 = vadd.f32 %v95, %v278
    %v321 = vadd.f32 %v96, %v283
    %v322 = vadd.f32 %v97, %v286
    %v323 = vadd.f32 %v98, %v291
    %v324 = vadd.f32 %v99, %v294
    %v325 = vadd.f32 %v100, %v299
    %v326 = vadd.f32 %v101, %v302
    %v327 = vadd.f32 %v102, %v307
    %v328 = vadd.f32 %v103, %v310
    %329 = vst [vmem:[#allocation7] sm:$0xff] %v313
    %330 = vst [vmem:[#allocation7 + $0x8] sm:$0xff] %v314
    %331 = vst [vmem:[#allocation7 + $0x10] sm:$0xff] %v315
    %332 = vst [vmem:[#allocation7 + $0x18] sm:$0xff] %v316
    %333 = vst [vmem:[#allocation7 + $0x20] sm:$0xff] %v317
    %334 = vst [vmem:[#allocation7 + $0x28] sm:$0xff] %v318
    %335 = vst [vmem:[#allocation7 + $0x30] sm:$0xff] %v319
    %336 = vst [vmem:[#allocation7 + $0x38] sm:$0xff] %v320
    %337 = vst [vmem:[#allocation7 + $0x40] sm:$0xff] %v321
    %338 = vst [vmem:[#allocation7 + $0x48] sm:$0xff] %v322
    %339 = vst [vmem:[#allocation7 + $0x50] sm:$0xff] %v323
    %340 = vst [vmem:[#allocation7 + $0x58] sm:$0xff] %v324
    %341 = vst [vmem:[#allocation7 + $0x60] sm:$0xff] %v325
    %342 = vst [vmem:[#allocation7 + $0x68] sm:$0xff] %v326
    %343 = vst [vmem:[#allocation7 + $0x70] sm:$0xff] %v327
    %344 = vst [vmem:[#allocation7 + $0x78] sm:$0xff] %v328
    // Predicated region
    $region30: #{tpu_custom_call.1} parent=1 // pred_check
      %p345 = pneg %p47
    $region31: #{tpu_custom_call.1} parent=1 // pred_check_branch
      %347 = sbr.rel (%p345) target = $region33
    $region32: #{tpu_custom_call.1} parent=1 // pred_region
      %v348 = vld [vmem:[#allocation7] sm:$0xff]
      %v349 = vld [vmem:[#allocation7 + $0x8] sm:$0xff]
      %v350 = vld [vmem:[#allocation7 + $0x10] sm:$0xff]
      %v351 = vld [vmem:[#allocation7 + $0x18] sm:$0xff]
      %v352 = vld [vmem:[#allocation7 + $0x20] sm:$0xff]
      %v353 = vld [vmem:[#allocation7 + $0x28] sm:$0xff]
      %v354 = vld [vmem:[#allocation7 + $0x30] sm:$0xff]
      %v355 = vld [vmem:[#allocation7 + $0x38] sm:$0xff]
      %v356 = vld [vmem:[#allocation7 + $0x40] sm:$0xff]
      %v357 = vld [vmem:[#allocation7 + $0x48] sm:$0xff]
      %v358 = vld [vmem:[#allocation7 + $0x50] sm:$0xff]
      %v359 = vld [vmem:[#allocation7 + $0x58] sm:$0xff]
      %v360 = vld [vmem:[#allocation7 + $0x60] sm:$0xff]
      %v361 = vld [vmem:[#allocation7 + $0x68] sm:$0xff]
      %v362 = vld [vmem:[#allocation7 + $0x70] sm:$0xff]
      %v363 = vld [vmem:[#allocation7 + $0x78] sm:$0xff]
      %v364 = vld [vmem:[%s2] sm:$0x1]
      %v366 = vlaneseq
      %v367 = vshrl.u32 %v366, 7
      %v368 = vsub.s32 0, %v367
      %v369 = vrot.slane %v364, %v368
      %v371 = vadd.f32 %v348, %v369
      %v372 = vadd.f32 %v349, %v369
      %v373 = vadd.f32 %v350, %v369
      %v374 = vadd.f32 %v351, %v369
      %v375 = vadd.f32 %v352, %v369
      %v376 = vadd.f32 %v353, %v369
      %v377 = vadd.f32 %v354, %v369
      %v378 = vadd.f32 %v355, %v369
      %v379 = vadd.f32 %v356, %v369
      %v380 = vadd.f32 %v357, %v369
      %v381 = vadd.f32 %v358, %v369
      %v382 = vadd.f32 %v359, %v369
      %v383 = vadd.f32 %v360, %v369
      %v384 = vadd.f32 %v361, %v369
      %v385 = vadd.f32 %v362, %v369
      %v386 = vadd.f32 %v363, %v369
      %vm387 = vcmp.gt.f32.partialorder %v371, 0.0
      %vm388 = vcmp.gt.f32.partialorder %v372, 0.0
      %vm389 = vcmp.gt.f32.partialorder %v373, 0.0
      %vm390 = vcmp.gt.f32.partialorder %v374, 0.0
      %vm391 = vcmp.gt.f32.partialorder %v375, 0.0
      %vm392 = vcmp.gt.f32.partialorder %v376, 0.0
      %vm393 = vcmp.gt.f32.partialorder %v377, 0.0
      %vm394 = vcmp.gt.f32.partialorder %v378, 0.0
      %vm395 = vcmp.gt.f32.partialorder %v379, 0.0
      %vm396 = vcmp.gt.f32.partialorder %v380, 0.0
      %vm397 = vcmp.gt.f32.partialorder %v381, 0.0
      %vm398 = vcmp.gt.f32.partialorder %v382, 0.0
      %vm399 = vcmp.gt.f32.partialorder %v383, 0.0
      %vm400 = vcmp.gt.f32.partialorder %v384, 0.0
      %vm401 = vcmp.gt.f32.partialorder %v385, 0.0
      %vm402 = vcmp.gt.f32.partialorder %v386, 0.0
      %v403 = vld [vmem:[%s3] sm:$0x1]
      %v405 = vlaneseq
      %v406 = vshrl.u32 %v405, 7
      %v407 = vsub.s32 0, %v406
      %v408 = vrot.slane %v403, %v407
      %v410 = vmul.f32 %v408, %v371
      %v411 = vmul.f32 %v408, %v372
      %v412 = vmul.f32 %v408, %v373
      %v413 = vmul.f32 %v408, %v374
      %v414 = vmul.f32 %v408, %v375
      %v415 = vmul.f32 %v408, %v376
      %v416 = vmul.f32 %v408, %v377
      %v417 = vmul.f32 %v408, %v378
      %v418 = vmul.f32 %v408, %v379
      %v419 = vmul.f32 %v408, %v380
      %v420 = vmul.f32 %v408, %v381
      %v421 = vmul.f32 %v408, %v382
      %v422 = vmul.f32 %v408, %v383
      %v423 = vmul.f32 %v408, %v384
      %v424 = vmul.f32 %v408, %v385
      %v425 = vmul.f32 %v408, %v386
      %v426 = vsel %vm387, %v371, %v410
      %v427 = vsel %vm388, %v372, %v411
      %v428 = vsel %vm389, %v373, %v412
      %v429 = vsel %vm390, %v374, %v413
      %v430 = vsel %vm391, %v375, %v414
      %v431 = vsel %vm392, %v376, %v415
      %v432 = vsel %vm393, %v377, %v416
      %v433 = vsel %vm394, %v378, %v417
      %v434 = vsel %vm395, %v379, %v418
      %v435 = vsel %vm396, %v380, %v419
      %v436 = vsel %vm397, %v381, %v420
      %v437 = vsel %vm398, %v382, %v421
      %v438 = vsel %vm399, %v383, %v422
      %v439 = vsel %vm400, %v384, %v423
      %v440 = vsel %vm401, %v385, %v424
      %v441 = vsel %vm402, %v386, %v425
      %442 = vst [vmem:[#allocation7] sm:$0xff] %v426
      %443 = vst [vmem:[#allocation7 + $0x8] sm:$0xff] %v427
      %444 = vst [vmem:[#allocation7 + $0x10] sm:$0xff] %v428
      %445 = vst [vmem:[#allocation7 + $0x18] sm:$0xff] %v429
      %446 = vst [vmem:[#allocation7 + $0x20] sm:$0xff] %v430
      %447 = vst [vmem:[#allocation7 + $0x28] sm:$0xff] %v431
      %448 = vst [vmem:[#allocation7 + $0x30] sm:$0xff] %v432
      %449 = vst [vmem:[#allocation7 + $0x38] sm:$0xff] %v433
      %450 = vst [vmem:[#allocation7 + $0x40] sm:$0xff] %v434
      %451 = vst [vmem:[#allocation7 + $0x48] sm:$0xff] %v435
      %452 = vst [vmem:[#allocation7 + $0x50] sm:$0xff] %v436
      %453 = vst [vmem:[#allocation7 + $0x58] sm:$0xff] %v437
      %454 = vst [vmem:[#allocation7 + $0x60] sm:$0xff] %v438
      %455 = vst [vmem:[#allocation7 + $0x68] sm:$0xff] %v439
      %456 = vst [vmem:[#allocation7 + $0x70] sm:$0xff] %v440
      %457 = vst [vmem:[#allocation7 + $0x78] sm:$0xff] %v441
    $region33: #{tpu_custom_call.1} parent=1 // pred_fallthru
      _
    // Predicated region
    $region34: #{tpu_custom_call.1} parent=1 // pred_check
      _
    $region35: #{tpu_custom_call.1} parent=1 // pred_check_branch
      %459 = sbr.rel (0) target = $region37
    $region36: #{tpu_custom_call.1} parent=1 // pred_region
      %s461 = ssub.s32 2048, 2048
      %462 = vsyncadd [#allocation4], %s461
      %s463 = sshll.u32 [#allocation7], 4
      %s464 = int_to_ptr.vmem [resolvable:$true] %s463
      %469 = dma.vmem_to_hbm [thread:$0]  %s464, 2048, %s4, [#allocation4], 128, 128, 8
    $region37: #{tpu_custom_call.1} parent=1 // pred_fallthru
      _
    // Predicated region
    $region38: #{tpu_custom_call.1} parent=1 // pred_check
      _
    $region39: #{tpu_custom_call.1} parent=1 // pred_check_branch
      %471 = sbr.rel (0) target = $region41
    $region40: #{tpu_custom_call.1} parent=1 // pred_region
      %472 = dma.done [#allocation4], 2048
    $region41: #{tpu_custom_call.1} parent=1 // pred_fallthru
      _
    %473 = vsyncpa [#allocation3], 1
    %474 = vsyncpa [#allocation6], 1
    %475 = vsyncpa [#allocation4], 1

</llo_original>
